<compile_context>
chip_gen: v6e
topology: v6e:2x2x1
jax: 0.10.0
libtpu: 0.0.40
codegen_flags: <defaults>
</compile_context>

<pallas_src>
import math

import jax
import jax.numpy as jnp
from jax.experimental import pallas as pl
from jax.experimental.pallas import tpu as pltpu

# Table sizes from the module (freq='h' -> no minute table).
MONTH_SIZE = 13
DAY_SIZE = 32
WEEKDAY_SIZE = 7
HOUR_SIZE = 18            # as written in the reference module
PAD_ROWS = 32             # pad every table to 32 rows
NUM_FEATS = 4             # month, day, weekday, hour
TABLE_ROWS = NUM_FEATS * PAD_ROWS          # 128 -> one lane width
FEATURE_SIZES = (MONTH_SIZE, DAY_SIZE, WEEKDAY_SIZE, HOUR_SIZE)
BAND_OFFSETS = tuple(PAD_ROWS * f for f in range(NUM_FEATS))   # (0, 32, 64, 96)


def _round_up(x, m):
    return ((x + m - 1) // m) * m


def _fixed_embedding_table(c_in, d_model):
    """Replicates FixedEmbedding.__init__ weight construction."""
    position = jnp.arange(c_in, dtype=jnp.float32)[:, None]                 # (c_in, 1)
    div_term = jnp.exp(jnp.arange(0, d_model, 2, dtype=jnp.float32)
                       * (-(math.log(10000.0) / d_model)))                  # (d_model/2,)
    w = jnp.zeros((c_in, d_model), dtype=jnp.float32)
    w = w.at[:, 0::2].set(jnp.sin(position * div_term))
    w = w.at[:, 1::2].set(jnp.cos(position * div_term))
    return w


def make_combined_table(d_model):
    """Stack [month, day, weekday, hour] tables, each zero-padded to 32 rows."""
    tables = []
    for size in FEATURE_SIZES:
        t = _fixed_embedding_table(size, d_model)
        t = jnp.pad(t, ((0, PAD_ROWS - size), (0, 0)))
        tables.append(t)
    return jnp.concatenate(tables, axis=0)      # (128, d_model) float32


def _temporal_embed_kernel(idx_ref, table_ref, out_ref):
    # idx_ref:   (TM, 4)         int32       -- indices pre-offset by 32*f
    # table_ref: (128, d_model)  f32 / bf16  -- stacked padded tables
    # out_ref:   (TM, d_model)   float32
    idx = idx_ref[...]                                               # (TM, 4)
    tm = idx.shape[0]
    lane = jax.lax.broadcasted_iota(jnp.int32, (tm, TABLE_ROWS), 1)  # (TM, 128)

    # The four one-hot bands are disjoint (indices clamped to < 32 before the
    # +32*f offset), so boolean OR is the multi-hot sum; single cast at the end.
    hot = lane == idx[:, 0:1]
    for f in range(1, NUM_FEATS):
        hot = hot | (lane == idx[:, f:f + 1])

    out_ref[...] = jnp.dot(hot.astype(table_ref.dtype), table_ref[...],
                           preferred_element_type=jnp.float32
                           ).astype(out_ref.dtype)


def temporal_embedding(x, d_model, *, tm=1024, compute_dtype=jnp.float32):
    """x: (B, L, >=4) int — returns (B, L, d_model) float32.

    tm: token tile size (multiple of 8; multiples of 128 preferred).  Default
        1024 keeps double-buffered output (2*tm*d_model*4B) under the v7x
        32 MiB scoped-VMEM default for d_model <= ~2048 while saturating the
        HBM-write roofline on all generations.
    compute_dtype: dtype of the matmul operands.  bf16 is exact for the 0/1
        multi-hot and ~1e-3 relative for the table; useful on v5e where the
        f32 MXU rate (not HBM) can become the limiter.
    """
    assert d_model % 2 == 0, "FixedEmbedding requires even d_model"
    B, L, F = x.shape
    assert F >= NUM_FEATS

    idx = x[..., :NUM_FEATS].astype(jnp.int32).reshape(B * L, NUM_FEATS)
    # Clamp to each table's valid range, then pre-add band offsets so the
    # kernel builds a single multi-hot row per token.
    sizes = jnp.asarray(FEATURE_SIZES, dtype=jnp.int32)
    idx = jnp.clip(idx, 0, sizes - 1)
    idx = idx + jnp.asarray(BAND_OFFSETS, dtype=jnp.int32)

    N = B * L
    # Shrink the tile for small inputs; keep a multiple of 8 (sublane).
    tm = max(8, min(_round_up(tm, 8), _round_up(N, 128)))
    N_pad = _round_up(N, tm)
    if N_pad != N:
        # Padded rows land on valid table rows (index 0 of each band); their
        # output is sliced off below.
        idx = jnp.pad(idx, ((0, N_pad - N), (0, 0)))

    table = make_combined_table(d_model).astype(compute_dtype)   # (128, d_model)

    out = pl.pallas_call(
        _temporal_embed_kernel,
        out_shape=jax.ShapeDtypeStruct((N_pad, d_model), jnp.float32),
        grid_spec=pltpu.PrefetchScalarGridSpec(
            num_scalar_prefetch=0,
            grid=(N_pad // tm,),
            in_specs=[
                pl.BlockSpec((tm, NUM_FEATS), lambda i: (i, 0)),
                # Constant block index -> table DMA'd once, reused every step.
                pl.BlockSpec((TABLE_ROWS, d_model), lambda i: (0, 0)),
            ],
            out_specs=pl.BlockSpec((tm, d_model), lambda i: (i, 0)),
        ),
        compiler_params=pltpu.CompilerParams(
            dimension_semantics=("parallel",)),
    )(idx, table)

    return out[:N].reshape(B, L, d_model)


def temporal_embedding_ref(x, d_model):
    """Pure-JAX reference mirroring the torch forward."""
    x = x.astype(jnp.int32)
    month_t = _fixed_embedding_table(MONTH_SIZE, d_model)
    day_t = _fixed_embedding_table(DAY_SIZE, d_model)
    weekday_t = _fixed_embedding_table(WEEKDAY_SIZE, d_model)
    hour_t = _fixed_embedding_table(HOUR_SIZE, d_model)
    return (jnp.take(hour_t, x[:, :, 3], axis=0)
            + jnp.take(weekday_t, x[:, :, 2], axis=0)
            + jnp.take(day_t, x[:, :, 1], axis=0)
            + jnp.take(month_t, x[:, :, 0], axis=0))


def _random_inputs(key, B, L):
    k0, k1, k2, k3 = jax.random.split(key, 4)
    month = jax.random.randint(k0, (B, L, 1), 0, MONTH_SIZE)
    day = jax.random.randint(k1, (B, L, 1), 0, DAY_SIZE)
    weekday = jax.random.randint(k2, (B, L, 1), 0, WEEKDAY_SIZE)
    hour = jax.random.randint(k3, (B, L, 1), 0, HOUR_SIZE)
    return jnp.concatenate([month, day, weekday, hour], axis=-1).astype(jnp.int32)


if __name__ == "__main__":
    key = jax.random.PRNGKey(0)
    k_a, k_b = jax.random.split(key, 2)

    # Small demo: lane-dense d_model (production case).
    B, L, d_model = 2, 8, 128
    x = _random_inputs(k_a, B, L)
    out = jax.block_until_ready(temporal_embedding(x, d_model))
    ref = temporal_embedding_ref(x, d_model)
    assert out.shape == (B, L, d_model)
    assert jnp.allclose(out, ref, atol=1e-5, rtol=1e-5), "mismatch (d_model=128)"

    # Narrow d_model + multi-step grid (explicit smaller tile) sanity check.
    B2, L2, d2 = 4, 96, 32
    x2 = _random_inputs(k_b, B2, L2)
    out2 = jax.block_until_ready(temporal_embedding(x2, d2, tm=128))
    ref2 = temporal_embedding_ref(x2, d2)
    assert out2.shape == (B2, L2, d2)
    assert jnp.allclose(out2, ref2, atol=1e-5, rtol=1e-5), "mismatch (d_model=32)"

    print("KERNEL_OK")
</pallas_src>

<mosaic_0001>
module attributes {stable_mosaic.version = 11 : i64} {
  func.func @_temporal_embed_kernel(%arg0: i32, %arg1: memref<128x4xi32, #tpu.memory_space<vmem>>, %arg2: memref<128x128xf32, #tpu.memory_space<vmem>>, %arg3: memref<128x128xf32, #tpu.memory_space<vmem>>) attributes {dimension_semantics = [#tpu.dimension_semantics<parallel>], iteration_bounds = array<i64: 1>, scalar_prefetch = 0 : i64, scratch_operands = 0 : i64, tpu.core_type = #tpu.core_type<tc>, window_params = [{transform_indices = @transform_0, window_bounds = array<i64: 128, 4>}, {pipeline_mode = #tpu.pipeline_mode<synchronous>, transform_indices = @transform_1, window_bounds = array<i64: 128, 128>}, {transform_indices = @transform_2, window_bounds = array<i64: 128, 128>}]} {
    %c0 = arith.constant 0 : index
    %c0_0 = arith.constant 0 : index
    %0 = vector.load %arg1[%c0, %c0_0] : memref<128x4xi32, #tpu.memory_space<vmem>>, vector<128x4xi32>
    %1 = tpu.iota {dimensions = array<i32: 1>} : vector<128x128xi32>
    %2 = vector.extract_strided_slice %0 {offsets = [0, 0], sizes = [128, 1], strides = [1, 1]} : vector<128x4xi32> to vector<128x1xi32>
    %3 = vector.broadcast %2 : vector<128x1xi32> to vector<128x128xi32>
    %4 = arith.cmpi eq, %1, %3 : vector<128x128xi32>
    %5 = vector.extract_strided_slice %0 {offsets = [0, 1], sizes = [128, 1], strides = [1, 1]} : vector<128x4xi32> to vector<128x1xi32>
    %6 = vector.broadcast %5 : vector<128x1xi32> to vector<128x128xi32>
    %7 = arith.cmpi eq, %1, %6 : vector<128x128xi32>
    %8 = arith.ori %4, %7 : vector<128x128xi1>
    %9 = vector.extract_strided_slice %0 {offsets = [0, 2], sizes = [128, 1], strides = [1, 1]} : vector<128x4xi32> to vector<128x1xi32>
    %10 = vector.broadcast %9 : vector<128x1xi32> to vector<128x128xi32>
    %11 = arith.cmpi eq, %1, %10 : vector<128x128xi32>
    %12 = arith.ori %8, %11 : vector<128x128xi1>
    %13 = vector.extract_strided_slice %0 {offsets = [0, 3], sizes = [128, 1], strides = [1, 1]} : vector<128x4xi32> to vector<128x1xi32>
    %14 = vector.broadcast %13 : vector<128x1xi32> to vector<128x128xi32>
    %15 = arith.cmpi eq, %1, %14 : vector<128x128xi32>
    %16 = arith.ori %12, %15 : vector<128x128xi1>
    %17 = arith.extui %16 : vector<128x128xi1> to vector<128x128xi32>
    %18 = arith.sitofp %17 : vector<128x128xi32> to vector<128x128xf32>
    %c0_1 = arith.constant 0 : index
    %c0_2 = arith.constant 0 : index
    %19 = vector.load %arg2[%c0_1, %c0_2] : memref<128x128xf32, #tpu.memory_space<vmem>>, vector<128x128xf32>
    %cst = arith.constant dense<0.000000e+00> : vector<128x128xf32>
    %20 = tpu.matmul %18, %19, %cst {dimension_numbers = #tpu.dot_dimension_numbers<[1], [0], [0], [1], [0, 0, 1, 1], [], []>} : vector<128x128xf32>, vector<128x128xf32>, vector<128x128xf32> -> vector<128x128xf32>
    %c0_3 = arith.constant 0 : index
    %c0_4 = arith.constant 0 : index
    %21 = vector.load %arg3[%c0_3, %c0_4] : memref<128x128xf32, #tpu.memory_space<vmem>>, vector<128x128xf32>
    tpu.vector_store %arg3[%c0_3, %c0_4], %20 {strides = array<i32>} : memref<128x128xf32, #tpu.memory_space<vmem>>, vector<128x128xf32>,
    return
  }
  func.func @transform_0(%arg0: i32) -> (i32, i32) {
    %c0_i32 = arith.constant 0 : i32
    %c0_i32_0 = arith.constant 0 : i32
    return %arg0, %c0_i32 : i32, i32
  }
  func.func @transform_1(%arg0: i32) -> (i32, i32) {
    %c0_i32 = arith.constant 0 : i32
    %c0_i32_0 = arith.constant 0 : i32
    %c0_i32_1 = arith.constant 0 : i32
    return %c0_i32, %c0_i32_0 : i32, i32
  }
  func.func @transform_2(%arg0: i32) -> (i32, i32) {
    %c0_i32 = arith.constant 0 : i32
    %c0_i32_0 = arith.constant 0 : i32
    return %arg0, %c0_i32 : i32, i32
  }
}

</mosaic_0001>

<llo_original>
// kernel: tpu_custom_call.1
$region0: #{tpu_custom_call.1}
  #allocation0 [shape = 'u32[]', space=smem, size = 0x4, offset = 0x4, fixed_abs, tag = 'smem constant byte address 0x4 - core index']
  #allocation1 [shape = 'u32[144,128]{1,0:T(1,128)}', space=vmem, size = 0x12000, scoped, tag = 'internal scratch']
  %s0 = inlined_call_operand.vmem [shape: s32[128,4], index: 0, kind: input, shape index: {}]
  %s1 = inlined_call_operand.vmem [shape: f32[128,128], index: 1, kind: input, shape index: {}]
  %s2 = inlined_call_operand.hbm [shape: f32[128,128], index: 2, kind: output, shape index: {}]
  %s3 = sld [smem:[#allocation0]]
  $region18: #{tpu_custom_call.1} parent=0
    _
  %s5 = ssub.s32 1, %s3
  %s6 = scalar_select 0, %s5, %s3
  $region1: #{tpu_custom_call.1} parent=0
    #allocation2 [shape = 'u8[65536]{0}', space=vmem, size = 0x10000, scoped, tag = 'output window, operand 0, single buffered']
    #allocation3 [shape = 's32[1]{0}', space=sflag, size = 0x4, scoped, tag = 'scoped memory for tpu_custom_call.1']
    %7 = vsyncpa [#allocation3], 0
    // Predicated region
    $region2: #{tpu_custom_call.1} parent=1 // pred_check
      _
    $region3: #{tpu_custom_call.1} parent=1 // pred_check_branch
      %9 = sbr.rel (0) target = $region5
    $region4: #{tpu_custom_call.1} parent=1 // pred_region
      _
    $region5: #{tpu_custom_call.1} parent=1 // pred_fallthru
      _
    // Predicated region
    $region6: #{tpu_custom_call.1} parent=1 // pred_check
      _
    $region7: #{tpu_custom_call.1} parent=1 // pred_check_branch
      %11 = sbr.rel (0) target = $region9
    $region8: #{tpu_custom_call.1} parent=1 // pred_region
      _
    $region9: #{tpu_custom_call.1} parent=1 // pred_fallthru
      _
    %v12 = vld [vmem:[%s0] sm:$0xff]
    %v13 = vld [vmem:[%s0 + $0x8] sm:$0xff]
    %v14 = vld [vmem:[%s0 + $0x10] sm:$0xff]
    %v15 = vld [vmem:[%s0 + $0x18] sm:$0xff]
    %v16 = vld [vmem:[%s0 + $0x20] sm:$0xff]
    %v17 = vld [vmem:[%s0 + $0x28] sm:$0xff]
    %v18 = vld [vmem:[%s0 + $0x30] sm:$0xff]
    %v19 = vld [vmem:[%s0 + $0x38] sm:$0xff]
    %v20 = vld [vmem:[%s0 + $0x40] sm:$0xff]
    %v21 = vld [vmem:[%s0 + $0x48] sm:$0xff]
    %v22 = vld [vmem:[%s0 + $0x50] sm:$0xff]
    %v23 = vld [vmem:[%s0 + $0x58] sm:$0xff]
    %v24 = vld [vmem:[%s0 + $0x60] sm:$0xff]
    %v25 = vld [vmem:[%s0 + $0x68] sm:$0xff]
    %v26 = vld [vmem:[%s0 + $0x70] sm:$0xff]
    %v27 = vld [vmem:[%s0 + $0x78] sm:$0xff]
    %v28 = vlaneseq
    %v29 = vand.u32 %v28, 127
    %30 = vset.pattern.permute.xlu0 0
    %31 = vperm.xlu0 %30, %v12
    %v32 = vpop.permute.xlu0 %31
    %33 = vset.pattern.permute.xlu0 0
    %34 = vperm.xlu0 %33, %v13
    %v35 = vpop.permute.xlu0 %34
    %36 = vset.pattern.permute.xlu0 0
    %37 = vperm.xlu0 %36, %v14
    %v38 = vpop.permute.xlu0 %37
    %39 = vset.pattern.permute.xlu0 0
    %40 = vperm.xlu0 %39, %v15
    %v41 = vpop.permute.xlu0 %40
    %42 = vset.pattern.permute.xlu0 0
    %43 = vperm.xlu0 %42, %v16
    %v44 = vpop.permute.xlu0 %43
    %45 = vset.pattern.permute.xlu0 0
    %46 = vperm.xlu0 %45, %v17
    %v47 = vpop.permute.xlu0 %46
    %48 = vset.pattern.permute.xlu0 0
    %49 = vperm.xlu0 %48, %v18
    %v50 = vpop.permute.xlu0 %49
    %51 = vset.pattern.permute.xlu0 0
    %52 = vperm.xlu0 %51, %v19
    %v53 = vpop.permute.xlu0 %52
    %54 = vset.pattern.permute.xlu0 0
    %55 = vperm.xlu0 %54, %v20
    %v56 = vpop.permute.xlu0 %55
    %57 = vset.pattern.permute.xlu0 0
    %58 = vperm.xlu0 %57, %v21
    %v59 = vpop.permute.xlu0 %58
    %60 = vset.pattern.permute.xlu0 0
    %61 = vperm.xlu0 %60, %v22
    %v62 = vpop.permute.xlu0 %61
    %63 = vset.pattern.permute.xlu0 0
    %64 = vperm.xlu0 %63, %v23
    %v65 = vpop.permute.xlu0 %64
    %66 = vset.pattern.permute.xlu0 0
    %67 = vperm.xlu0 %66, %v24
    %v68 = vpop.permute.xlu0 %67
    %69 = vset.pattern.permute.xlu0 0
    %70 = vperm.xlu0 %69, %v25
    %v71 = vpop.permute.xlu0 %70
    %72 = vset.pattern.permute.xlu0 0
    %73 = vperm.xlu0 %72, %v26
    %v74 = vpop.permute.xlu0 %73
    %75 = vset.pattern.permute.xlu0 0
    %76 = vperm.xlu0 %75, %v27
    %v77 = vpop.permute.xlu0 %76
    %vm78 = vcmp.eq.s32.totalorder %v29, %v32
    %vm79 = vcmp.eq.s32.totalorder %v29, %v35
    %vm80 = vcmp.eq.s32.totalorder %v29, %v38
    %vm81 = vcmp.eq.s32.totalorder %v29, %v41
    %vm82 = vcmp.eq.s32.totalorder %v29, %v44
    %vm83 = vcmp.eq.s32.totalorder %v29, %v47
    %vm84 = vcmp.eq.s32.totalorder %v29, %v50
    %vm85 = vcmp.eq.s32.totalorder %v29, %v53
    %vm86 = vcmp.eq.s32.totalorder %v29, %v56
    %vm87 = vcmp.eq.s32.totalorder %v29, %v59
    %vm88 = vcmp.eq.s32.totalorder %v29, %v62
    %vm89 = vcmp.eq.s32.totalorder %v29, %v65
    %vm90 = vcmp.eq.s32.totalorder %v29, %v68
    %vm91 = vcmp.eq.s32.totalorder %v29, %v71
    %vm92 = vcmp.eq.s32.totalorder %v29, %v74
    %vm93 = vcmp.eq.s32.totalorder %v29, %v77
    %94 = vset.pattern.permute.xlu0 1
    %95 = vperm.xlu0 %94, %v12
    %v96 = vpop.permute.xlu0 %95
    %97 = vset.pattern.permute.xlu0 1
    %98 = vperm.xlu0 %97, %v13
    %v99 = vpop.permute.xlu0 %98
    %100 = vset.pattern.permute.xlu0 1
    %101 = vperm.xlu0 %100, %v14
    %v102 = vpop.permute.xlu0 %101
    %103 = vset.pattern.permute.xlu0 1
    %104 = vperm.xlu0 %103, %v15
    %v105 = vpop.permute.xlu0 %104
    %106 = vset.pattern.permute.xlu0 1
    %107 = vperm.xlu0 %106, %v16
    %v108 = vpop.permute.xlu0 %107
    %109 = vset.pattern.permute.xlu0 1
    %110 = vperm.xlu0 %109, %v17
    %v111 = vpop.permute.xlu0 %110
    %112 = vset.pattern.permute.xlu0 1
    %113 = vperm.xlu0 %112, %v18
    %v114 = vpop.permute.xlu0 %113
    %115 = vset.pattern.permute.xlu0 1
    %116 = vperm.xlu0 %115, %v19
    %v117 = vpop.permute.xlu0 %116
    %118 = vset.pattern.permute.xlu0 1
    %119 = vperm.xlu0 %118, %v20
    %v120 = vpop.permute.xlu0 %119
    %121 = vset.pattern.permute.xlu0 1
    %122 = vperm.xlu0 %121, %v21
    %v123 = vpop.permute.xlu0 %122
    %124 = vset.pattern.permute.xlu0 1
    %125 = vperm.xlu0 %124, %v22
    %v126 = vpop.permute.xlu0 %125
    %127 = vset.pattern.permute.xlu0 1
    %128 = vperm.xlu0 %127, %v23
    %v129 = vpop.permute.xlu0 %128
    %130 = vset.pattern.permute.xlu0 1
    %131 = vperm.xlu0 %130, %v24
    %v132 = vpop.permute.xlu0 %131
    %133 = vset.pattern.permute.xlu0 1
    %134 = vperm.xlu0 %133, %v25
    %v135 = vpop.permute.xlu0 %134
    %136 = vset.pattern.permute.xlu0 1
    %137 = vperm.xlu0 %136, %v26
    %v138 = vpop.permute.xlu0 %137
    %139 = vset.pattern.permute.xlu0 1
    %140 = vperm.xlu0 %139, %v27
    %v141 = vpop.permute.xlu0 %140
    %vm142 = vcmp.eq.s32.totalorder %v29, %v96
    %vm143 = vcmp.eq.s32.totalorder %v29, %v99
    %vm144 = vcmp.eq.s32.totalorder %v29, %v102
    %vm145 = vcmp.eq.s32.totalorder %v29, %v105
    %vm146 = vcmp.eq.s32.totalorder %v29, %v108
    %vm147 = vcmp.eq.s32.totalorder %v29, %v111
    %vm148 = vcmp.eq.s32.totalorder %v29, %v114
    %vm149 = vcmp.eq.s32.totalorder %v29, %v117
    %vm150 = vcmp.eq.s32.totalorder %v29, %v120
    %vm151 = vcmp.eq.s32.totalorder %v29, %v123
    %vm152 = vcmp.eq.s32.totalorder %v29, %v126
    %vm153 = vcmp.eq.s32.totalorder %v29, %v129
    %vm154 = vcmp.eq.s32.totalorder %v29, %v132
    %vm155 = vcmp.eq.s32.totalorder %v29, %v135
    %vm156 = vcmp.eq.s32.totalorder %v29, %v138
    %vm157 = vcmp.eq.s32.totalorder %v29, %v141
    %vm158 = vmor %vm78, %vm142
    %vm159 = vmor %vm79, %vm143
    %vm160 = vmor %vm80, %vm144
    %vm161 = vmor %vm81, %vm145
    %vm162 = vmor %vm82, %vm146
    %vm163 = vmor %vm83, %vm147
    %vm164 = vmor %vm84, %vm148
    %vm165 = vmor %vm85, %vm149
    %vm166 = vmor %vm86, %vm150
    %vm167 = vmor %vm87, %vm151
    %vm168 = vmor %vm88, %vm152
    %vm169 = vmor %vm89, %vm153
    %vm170 = vmor %vm90, %vm154
    %vm171 = vmor %vm91, %vm155
    %vm172 = vmor %vm92, %vm156
    %vm173 = vmor %vm93, %vm157
    %174 = vset.pattern.permute.xlu0 2
    %175 = vperm.xlu0 %174, %v12
    %v176 = vpop.permute.xlu0 %175
    %177 = vset.pattern.permute.xlu0 2
    %178 = vperm.xlu0 %177, %v13
    %v179 = vpop.permute.xlu0 %178
    %180 = vset.pattern.permute.xlu0 2
    %181 = vperm.xlu0 %180, %v14
    %v182 = vpop.permute.xlu0 %181
    %183 = vset.pattern.permute.xlu0 2
    %184 = vperm.xlu0 %183, %v15
    %v185 = vpop.permute.xlu0 %184
    %186 = vset.pattern.permute.xlu0 2
    %187 = vperm.xlu0 %186, %v16
    %v188 = vpop.permute.xlu0 %187
    %189 = vset.pattern.permute.xlu0 2
    %190 = vperm.xlu0 %189, %v17
    %v191 = vpop.permute.xlu0 %190
    %192 = vset.pattern.permute.xlu0 2
    %193 = vperm.xlu0 %192, %v18
    %v194 = vpop.permute.xlu0 %193
    %195 = vset.pattern.permute.xlu0 2
    %196 = vperm.xlu0 %195, %v19
    %v197 = vpop.permute.xlu0 %196
    %198 = vset.pattern.permute.xlu0 2
    %199 = vperm.xlu0 %198, %v20
    %v200 = vpop.permute.xlu0 %199
    %201 = vset.pattern.permute.xlu0 2
    %202 = vperm.xlu0 %201, %v21
    %v203 = vpop.permute.xlu0 %202
    %204 = vset.pattern.permute.xlu0 2
    %205 = vperm.xlu0 %204, %v22
    %v206 = vpop.permute.xlu0 %205
    %207 = vset.pattern.permute.xlu0 2
    %208 = vperm.xlu0 %207, %v23
    %v209 = vpop.permute.xlu0 %208
    %210 = vset.pattern.permute.xlu0 2
    %211 = vperm.xlu0 %210, %v24
    %v212 = vpop.permute.xlu0 %211
    %213 = vset.pattern.permute.xlu0 2
    %214 = vperm.xlu0 %213, %v25
    %v215 = vpop.permute.xlu0 %214
    %216 = vset.pattern.permute.xlu0 2
    %217 = vperm.xlu0 %216, %v26
    %v218 = vpop.permute.xlu0 %217
    %219 = vset.pattern.permute.xlu0 2
    %220 = vperm.xlu0 %219, %v27
    %v221 = vpop.permute.xlu0 %220
    %vm222 = vcmp.eq.s32.totalorder %v29, %v176
    %vm223 = vcmp.eq.s32.totalorder %v29, %v179
    %vm224 = vcmp.eq.s32.totalorder %v29, %v182
    %vm225 = vcmp.eq.s32.totalorder %v29, %v185
    %vm226 = vcmp.eq.s32.totalorder %v29, %v188
    %vm227 = vcmp.eq.s32.totalorder %v29, %v191
    %vm228 = vcmp.eq.s32.totalorder %v29, %v194
    %vm229 = vcmp.eq.s32.totalorder %v29, %v197
    %vm230 = vcmp.eq.s32.totalorder %v29, %v200
    %vm231 = vcmp.eq.s32.totalorder %v29, %v203
    %vm232 = vcmp.eq.s32.totalorder %v29, %v206
    %vm233 = vcmp.eq.s32.totalorder %v29, %v209
    %vm234 = vcmp.eq.s32.totalorder %v29, %v212
    %vm235 = vcmp.eq.s32.totalorder %v29, %v215
    %vm236 = vcmp.eq.s32.totalorder %v29, %v218
    %vm237 = vcmp.eq.s32.totalorder %v29, %v221
    %vm238 = vmor %vm158, %vm222
    %vm239 = vmor %vm159, %vm223
    %vm240 = vmor %vm160, %vm224
    %vm241 = vmor %vm161, %vm225
    %vm242 = vmor %vm162, %vm226
    %vm243 = vmor %vm163, %vm227
    %vm244 = vmor %vm164, %vm228
    %vm245 = vmor %vm165, %vm229
    %vm246 = vmor %vm166, %vm230
    %vm247 = vmor %vm167, %vm231
    %vm248 = vmor %vm168, %vm232
    %vm249 = vmor %vm169, %vm233
    %vm250 = vmor %vm170, %vm234
    %vm251 = vmor %vm171, %vm235
    %vm252 = vmor %vm172, %vm236
    %vm253 = vmor %vm173, %vm237
    %254 = vset.pattern.permute.xlu0 3
    %255 = vperm.xlu0 %254, %v12
    %v256 = vpop.permute.xlu0 %255
    %257 = vset.pattern.permute.xlu0 3
    %258 = vperm.xlu0 %257, %v13
    %v259 = vpop.permute.xlu0 %258
    %260 = vset.pattern.permute.xlu0 3
    %261 = vperm.xlu0 %260, %v14
    %v262 = vpop.permute.xlu0 %261
    %263 = vset.pattern.permute.xlu0 3
    %264 = vperm.xlu0 %263, %v15
    %v265 = vpop.permute.xlu0 %264
    %266 = vset.pattern.permute.xlu0 3
    %267 = vperm.xlu0 %266, %v16
    %v268 = vpop.permute.xlu0 %267
    %269 = vset.pattern.permute.xlu0 3
    %270 = vperm.xlu0 %269, %v17
    %v271 = vpop.permute.xlu0 %270
    %272 = vset.pattern.permute.xlu0 3
    %273 = vperm.xlu0 %272, %v18
    %v274 = vpop.permute.xlu0 %273
    %275 = vset.pattern.permute.xlu0 3
    %276 = vperm.xlu0 %275, %v19
    %v277 = vpop.permute.xlu0 %276
    %278 = vset.pattern.permute.xlu0 3
    %279 = vperm.xlu0 %278, %v20
    %v280 = vpop.permute.xlu0 %279
    %281 = vset.pattern.permute.xlu0 3
    %282 = vperm.xlu0 %281, %v21
    %v283 = vpop.permute.xlu0 %282
    %284 = vset.pattern.permute.xlu0 3
    %285 = vperm.xlu0 %284, %v22
    %v286 = vpop.permute.xlu0 %285
    %287 = vset.pattern.permute.xlu0 3
    %288 = vperm.xlu0 %287, %v23
    %v289 = vpop.permute.xlu0 %288
    %290 = vset.pattern.permute.xlu0 3
    %291 = vperm.xlu0 %290, %v24
    %v292 = vpop.permute.xlu0 %291
    %293 = vset.pattern.permute.xlu0 3
    %294 = vperm.xlu0 %293, %v25
    %v295 = vpop.permute.xlu0 %294
    %296 = vset.pattern.permute.xlu0 3
    %297 = vperm.xlu0 %296, %v26
    %v298 = vpop.permute.xlu0 %297
    %299 = vset.pattern.permute.xlu0 3
    %300 = vperm.xlu0 %299, %v27
    %v301 = vpop.permute.xlu0 %300
    %vm302 = vcmp.eq.s32.totalorder %v29, %v256
    %vm303 = vcmp.eq.s32.totalorder %v29, %v259
    %vm304 = vcmp.eq.s32.totalorder %v29, %v262
    %vm305 = vcmp.eq.s32.totalorder %v29, %v265
    %vm306 = vcmp.eq.s32.totalorder %v29, %v268
    %vm307 = vcmp.eq.s32.totalorder %v29, %v271
    %vm308 = vcmp.eq.s32.totalorder %v29, %v274
    %vm309 = vcmp.eq.s32.totalorder %v29, %v277
    %vm310 = vcmp.eq.s32.totalorder %v29, %v280
    %vm311 = vcmp.eq.s32.totalorder %v29, %v283
    %vm312 = vcmp.eq.s32.totalorder %v29, %v286
    %vm313 = vcmp.eq.s32.totalorder %v29, %v289
    %vm314 = vcmp.eq.s32.totalorder %v29, %v292
    %vm315 = vcmp.eq.s32.totalorder %v29, %v295
    %vm316 = vcmp.eq.s32.totalorder %v29, %v298
    %vm317 = vcmp.eq.s32.totalorder %v29, %v301
    %vm318 = vmor %vm238, %vm302
    %vm319 = vmor %vm239, %vm303
    %vm320 = vmor %vm240, %vm304
    %vm321 = vmor %vm241, %vm305
    %vm322 = vmor %vm242, %vm306
    %vm323 = vmor %vm243, %vm307
    %vm324 = vmor %vm244, %vm308
    %vm325 = vmor %vm245, %vm309
    %vm326 = vmor %vm246, %vm310
    %vm327 = vmor %vm247, %vm311
    %vm328 = vmor %vm248, %vm312
    %vm329 = vmor %vm249, %vm313
    %vm330 = vmor %vm250, %vm314
    %vm331 = vmor %vm251, %vm315
    %vm332 = vmor %vm252, %vm316
    %vm333 = vmor %vm253, %vm317
    %v334 = vsel %vm318, 1, 0
    %v335 = vsel %vm319, 1, 0
    %v336 = vsel %vm320, 1, 0
    %v337 = vsel %vm321, 1, 0
    %v338 = vsel %vm322, 1, 0
    %v339 = vsel %vm323, 1, 0
    %v340 = vsel %vm324, 1, 0
    %v341 = vsel %vm325, 1, 0
    %v342 = vsel %vm326, 1, 0
    %v343 = vsel %vm327, 1, 0
    %v344 = vsel %vm328, 1, 0
    %v345 = vsel %vm329, 1, 0
    %v346 = vsel %vm330, 1, 0
    %v347 = vsel %vm331, 1, 0
    %v348 = vsel %vm332, 1, 0
    %v349 = vsel %vm333, 1, 0
    %v350 = vcvt.s32.f32 %v334
    %v351 = vcvt.s32.f32 %v335
    %v352 = vcvt.s32.f32 %v336
    %v353 = vcvt.s32.f32 %v337
    %v354 = vcvt.s32.f32 %v338
    %v355 = vcvt.s32.f32 %v339
    %v356 = vcvt.s32.f32 %v340
    %v357 = vcvt.s32.f32 %v341
    %v358 = vcvt.s32.f32 %v342
    %v359 = vcvt.s32.f32 %v343
    %v360 = vcvt.s32.f32 %v344
    %v361 = vcvt.s32.f32 %v345
    %v362 = vcvt.s32.f32 %v346
    %v363 = vcvt.s32.f32 %v347
    %v364 = vcvt.s32.f32 %v348
    %v365 = vcvt.s32.f32 %v349
    %v366 = vld [vmem:[%s1] sm:$0xff]
    %v367 = vld [vmem:[%s1 + $0x8] sm:$0xff]
    %v368 = vld [vmem:[%s1 + $0x10] sm:$0xff]
    %v369 = vld [vmem:[%s1 + $0x18] sm:$0xff]
    %v370 = vld [vmem:[%s1 + $0x20] sm:$0xff]
    %v371 = vld [vmem:[%s1 + $0x28] sm:$0xff]
    %v372 = vld [vmem:[%s1 + $0x30] sm:$0xff]
    %v373 = vld [vmem:[%s1 + $0x38] sm:$0xff]
    %v374 = vld [vmem:[%s1 + $0x40] sm:$0xff]
    %v375 = vld [vmem:[%s1 + $0x48] sm:$0xff]
    %v376 = vld [vmem:[%s1 + $0x50] sm:$0xff]
    %v377 = vld [vmem:[%s1 + $0x58] sm:$0xff]
    %v378 = vld [vmem:[%s1 + $0x60] sm:$0xff]
    %v379 = vld [vmem:[%s1 + $0x68] sm:$0xff]
    %v380 = vld [vmem:[%s1 + $0x70] sm:$0xff]
    %v381 = vld [vmem:[%s1 + $0x78] sm:$0xff]
    %382 = vmatprep.subr.mxu0 0.0
    %383 = vmatpush1.msra.mxu0 %v381
    %384 = vmatprep.subr.mxu0 0.0
    %385 = vmatpush1.msra.mxu0 %v380
    %386 = vmatprep.subr.mxu0 0.0
    %387 = vmatpush1.msra.mxu0 %v379
    %388 = vmatprep.subr.mxu0 0.0
    %389 = vmatpush1.msra.mxu0 %v378
    %390 = vmatprep.subr.mxu0 0.0
    %391 = vmatpush1.msra.mxu0 %v377
    %392 = vmatprep.subr.mxu0 0.0
    %393 = vmatpush1.msra.mxu0 %v376
    %394 = vmatprep.subr.mxu0 0.0
    %395 = vmatpush1.msra.mxu0 %v375
    %396 = vmatprep.subr.mxu0 0.0
    %397 = vmatpush1.msra.mxu0 %v374
    %398 = vmatprep.subr.mxu0 0.0
    %399 = vmatpush1.msra.mxu0 %v373
    %400 = vmatprep.subr.mxu0 0.0
    %401 = vmatpush1.msra.mxu0 %v372
    %402 = vmatprep.subr.mxu0 0.0
    %403 = vmatpush1.msra.mxu0 %v371
    %404 = vmatprep.subr.mxu0 0.0
    %405 = vmatpush1.msra.mxu0 %v370
    %406 = vmatprep.subr.mxu0 0.0
    %407 = vmatpush1.msra.mxu0 %v369
    %408 = vmatprep.subr.mxu0 0.0
    %409 = vmatpush1.msra.mxu0 %v368
    %410 = vmatprep.subr.mxu0 0.0
    %411 = vmatpush1.msra.mxu0 %v367
    %412 = vmatprep.subr.mxu0 0.0
    %413 = vmatpush1.msra.mxu0 %v366
    %414 = vmatprep.subr.mxu0 0.0
    %415 = vmatpush2.msra.mxu0 0.0
    %416 = vmatprep.subr.mxu0 0.0
    %417 = vmatpush2.msra.mxu0 0.0
    %418 = vmatprep.subr.mxu0 0.0
    %419 = vmatpush2.msra.mxu0 0.0
    %420 = vmatprep.subr.mxu0 0.0
    %421 = vmatpush2.msra.mxu0 0.0
    %422 = vmatprep.subr.mxu0 0.0
    %423 = vmatpush2.msra.mxu0 0.0
    %424 = vmatprep.subr.mxu0 0.0
    %425 = vmatpush2.msra.mxu0 0.0
    %426 = vmatprep.subr.mxu0 0.0
    %427 = vmatpush2.msra.mxu0 0.0
    %428 = vmatprep.subr.mxu0 0.0
    %429 = vmatpush2.msra.mxu0 0.0
    %430 = vmatprep.subr.mxu0 0.0
    %431 = vmatpush2.msra.mxu0 0.0
    %432 = vmatprep.subr.mxu0 0.0
    %433 = vmatpush2.msra.mxu0 0.0
    %434 = vmatprep.subr.mxu0 0.0
    %435 = vmatpush2.msra.mxu0 0.0
    %436 = vmatprep.subr.mxu0 0.0
    %437 = vmatpush2.msra.mxu0 0.0
    %438 = vmatprep.subr.mxu0 0.0
    %439 = vmatpush2.msra.mxu0 0.0
    %440 = vmatprep.subr.mxu0 0.0
    %441 = vmatpush2.msra.mxu0 0.0
    %442 = vmatprep.subr.mxu0 0.0
    %443 = vmatpush2.msra.mxu0 0.0
    %444 = vmatprep.subr.mxu0 0.0
    %445 = vmatpush2.msra.mxu0 0.0
    %446 = vmatprep.mubr.f32.mxu0 0.0
    %447 = vmatmul.mubr.f32.gmra.mxu0 %v350
    %v448 = vpop.f32.mrf.mxu0
    %v449 = vadd.f32 0.0, %v448
    %v450 = vpop.f32.mrf.mxu0
    %451 = vmatprep.mubr.f32.mxu0 0.0
    %452 = vmatmul.mubr.f32.gmra.mxu0 %v351
    %v453 = vpop.f32.mrf.mxu0
    %v454 = vadd.f32 0.0, %v453
    %v455 = vpop.f32.mrf.mxu0
    %456 = vmatprep.mubr.f32.mxu0 0.0
    %457 = vmatmul.mubr.f32.gmra.mxu0 %v352
    %v458 = vpop.f32.mrf.mxu0
    %v459 = vadd.f32 0.0, %v458
    %v460 = vpop.f32.mrf.mxu0
    %461 = vmatprep.mubr.f32.mxu0 0.0
    %462 = vmatmul.mubr.f32.gmra.mxu0 %v353
    %v463 = vpop.f32.mrf.mxu0
    %v464 = vadd.f32 0.0, %v463
    %v465 = vpop.f32.mrf.mxu0
    %466 = vmatprep.mubr.f32.mxu0 0.0
    %467 = vmatmul.mubr.f32.gmra.mxu0 %v354
    %v468 = vpop.f32.mrf.mxu0
    %v469 = vadd.f32 0.0, %v468
    %v470 = vpop.f32.mrf.mxu0
    %471 = vmatprep.mubr.f32.mxu0 0.0
    %472 = vmatmul.mubr.f32.gmra.mxu0 %v355
    %v473 = vpop.f32.mrf.mxu0
    %v474 = vadd.f32 0.0, %v473
    %v475 = vpop.f32.mrf.mxu0
    %476 = vmatprep.mubr.f32.mxu0 0.0
    %477 = vmatmul.mubr.f32.gmra.mxu0 %v356
    %v478 = vpop.f32.mrf.mxu0
    %v479 = vadd.f32 0.0, %v478
    %v480 = vpop.f32.mrf.mxu0
    %481 = vmatprep.mubr.f32.mxu0 0.0
    %482 = vmatmul.mubr.f32.gmra.mxu0 %v357
    %v483 = vpop.f32.mrf.mxu0
    %v484 = vadd.f32 0.0, %v483
    %v485 = vpop.f32.mrf.mxu0
    %486 = vmatprep.mubr.f32.mxu0 0.0
    %487 = vmatmul.mubr.f32.gmra.mxu0 %v358
    %v488 = vpop.f32.mrf.mxu0
    %v489 = vadd.f32 0.0, %v488
    %v490 = vpop.f32.mrf.mxu0
    %491 = vmatprep.mubr.f32.mxu0 0.0
    %492 = vmatmul.mubr.f32.gmra.mxu0 %v359
    %v493 = vpop.f32.mrf.mxu0
    %v494 = vadd.f32 0.0, %v493
    %v495 = vpop.f32.mrf.mxu0
    %496 = vmatprep.mubr.f32.mxu0 0.0
    %497 = vmatmul.mubr.f32.gmra.mxu0 %v360
    %v498 = vpop.f32.mrf.mxu0
    %v499 = vadd.f32 0.0, %v498
    %v500 = vpop.f32.mrf.mxu0
    %501 = vmatprep.mubr.f32.mxu0 0.0
    %502 = vmatmul.mubr.f32.gmra.mxu0 %v361
    %v503 = vpop.f32.mrf.mxu0
    %v504 = vadd.f32 0.0, %v503
    %v505 = vpop.f32.mrf.mxu0
    %506 = vmatprep.mubr.f32.mxu0 0.0
    %507 = vmatmul.mubr.f32.gmra.mxu0 %v362
    %v508 = vpop.f32.mrf.mxu0
    %v509 = vadd.f32 0.0, %v508
    %v510 = vpop.f32.mrf.mxu0
    %511 = vmatprep.mubr.f32.mxu0 0.0
    %512 = vmatmul.mubr.f32.gmra.mxu0 %v363
    %v513 = vpop.f32.mrf.mxu0
    %v514 = vadd.f32 0.0, %v513
    %v515 = vpop.f32.mrf.mxu0
    %516 = vmatprep.mubr.f32.mxu0 0.0
    %517 = vmatmul.mubr.f32.gmra.mxu0 %v364
    %v518 = vpop.f32.mrf.mxu0
    %v519 = vadd.f32 0.0, %v518
    %v520 = vpop.f32.mrf.mxu0
    %521 = vmatprep.mubr.f32.mxu0 0.0
    %522 = vmatmul.mubr.f32.gmra.mxu0 %v365
    %v523 = vpop.f32.mrf.mxu0
    %v524 = vadd.f32 0.0, %v523
    %v525 = vpop.f32.mrf.mxu0
    %526 = vdwg.mxu0
    %527 = vst [vmem:[#allocation2] sm:$0xff] %v449
    %528 = vst [vmem:[#allocation2 + $0x8] sm:$0xff] %v454
    %529 = vst [vmem:[#allocation2 + $0x10] sm:$0xff] %v459
    %530 = vst [vmem:[#allocation2 + $0x18] sm:$0xff] %v464
    %531 = vst [vmem:[#allocation2 + $0x20] sm:$0xff] %v469
    %532 = vst [vmem:[#allocation2 + $0x28] sm:$0xff] %v474
    %533 = vst [vmem:[#allocation2 + $0x30] sm:$0xff] %v479
    %534 = vst [vmem:[#allocation2 + $0x38] sm:$0xff] %v484
    %535 = vst [vmem:[#allocation2 + $0x40] sm:$0xff] %v489
    %536 = vst [vmem:[#allocation2 + $0x48] sm:$0xff] %v494
    %537 = vst [vmem:[#allocation2 + $0x50] sm:$0xff] %v499
    %538 = vst [vmem:[#allocation2 + $0x58] sm:$0xff] %v504
    %539 = vst [vmem:[#allocation2 + $0x60] sm:$0xff] %v509
    %540 = vst [vmem:[#allocation2 + $0x68] sm:$0xff] %v514
    %541 = vst [vmem:[#allocation2 + $0x70] sm:$0xff] %v519
    %542 = vst [vmem:[#allocation2 + $0x78] sm:$0xff] %v524
    // Predicated region
    $region10: #{tpu_custom_call.1} parent=1 // pred_check
      _
    $region11: #{tpu_custom_call.1} parent=1 // pred_check_branch
      %544 = sbr.rel (0) target = $region13
    $region12: #{tpu_custom_call.1} parent=1 // pred_region
      %s546 = ssub.s32 2048, 2048
      %547 = vsyncadd [#allocation3], %s546
      %s548 = sshll.u32 [#allocation2], 4
      %s549 = int_to_ptr.vmem [resolvable:$true] %s548
      %554 = dma.vmem_to_hbm [thread:$0]  %s549, 2048, %s2, [#allocation3], 128, 128, 8
    $region13: #{tpu_custom_call.1} parent=1 // pred_fallthru
      _
    // Predicated region
    $region14: #{tpu_custom_call.1} parent=1 // pred_check
      _
    $region15: #{tpu_custom_call.1} parent=1 // pred_check_branch
      %556 = sbr.rel (0) target = $region17
    $region16: #{tpu_custom_call.1} parent=1 // pred_region
      %557 = dma.done [#allocation3], 2048
    $region17: #{tpu_custom_call.1} parent=1 // pred_fallthru
      _
    %558 = vsyncpa [#allocation3], 1

</llo_original>
